<compile_context>
chip_gen: v6e
topology: v6e:2x2x1
jax: 0.10.0
libtpu: 0.0.40
codegen_flags: <defaults>
</compile_context>

<pallas_src>
import functools

import jax
import jax.numpy as jnp
from jax.experimental import pallas as pl
from jax.experimental.pallas import tpu as pltpu


# ----------------------------------------------------------------------------
# Pallas kernel: fused 3x3 conv (single K=9*Cin matmul) + bias + ReLU
# ----------------------------------------------------------------------------
def _conv3x3_bias_relu_kernel(x_ref, w_ref, b_ref, m_ref, o_ref, win_ref,
                              *, H, W, Cin, Cout, B):
    # x_ref:   (B, Cin, L)      bf16  L = H*W + 2*(W+1) (flattened, padded, guarded)
    # w_ref:   (Cout, 9*Cin)    bf16  column order = (kh*3 + kw)*Cin + cin
    # b_ref:   (Cout, 1)        f32
    # m_ref:   (2, H*W)         bf16  row 0: not-left-edge mask, row 1: not-right-edge
    # o_ref:   (B, Cout, H*W)   f32   lane-dense transposed output
    # win_ref: (9*Cin, B*H*W)   bf16  stacked-window scratch (im2col in VMEM only)
    HW = H * W
    not_left = m_ref[0:1, :]          # (1, HW), broadcasts over Cin sublanes
    not_right = m_ref[1:2, :]

    # Build the stacked window: 9 static lane-offset slices per image, boundary
    # columns zeroed with a precomputed multiply-mask (no iota / select here).
    for b in range(B):
        for kh in range(3):
            for kw in range(3):
                start = kh * W + kw                       # static lane offset
                win = x_ref[b, :, start:start + HW]       # (Cin, HW) in-VMEM slice
                if kw == 0:
                    win = win * not_left
                elif kw == 2:
                    win = win * not_right
                t = kh * 3 + kw
                win_ref[t * Cin:(t + 1) * Cin, b * HW:(b + 1) * HW] = win

    # One MXU push per grid step: (Cout, 36) @ (36, B*HW), f32 accumulation.
    acc = jnp.dot(w_ref[...], win_ref[...], preferred_element_type=jnp.float32)
    acc = jnp.maximum(acc + b_ref[...], 0.0)              # bias + ReLU in f32

    for b in range(B):                                    # lane-dense (HW % 128 == 0)
        o_ref[b, :, :] = acc[:, b * HW:(b + 1) * HW].astype(o_ref.dtype)


def _pick_images_per_step(n):
    """Largest of (4, 2) that divides N while keeping >=2 grid steps (v7x has
    2 TensorCores; collapsing to one step would serialize the batch)."""
    for cand in (4, 2):
        if n % cand == 0 and n // cand >= 2:
            return cand
    return 1


@jax.jit
def conv3x3_bias_relu(x_nchw, weight, bias):
    """Fused Conv2d(3x3, pad=1, bias) + ReLU.  x: (N,Cin,H,W) -> (N,Cout,H,W)."""
    N, Cin, H, W = x_nchw.shape
    Cout, Cin_w, KH, KW = weight.shape
    assert Cin_w == Cin and KH == 3 and KW == 3, \
        "guard/halo math is hard-wired to 3x3, stride 1, padding 1"
    HW = H * W
    L = HW + 2 * (W + 1)
    B = _pick_images_per_step(N)

    # Single-pass glue: flatten, cast to bf16, then ONE pad that supplies both
    # the H padding (W zeros per side in flattened layout) and the 1-lane guard.
    xg = jnp.pad(x_nchw.reshape(N, Cin, HW).astype(jnp.bfloat16),
                 ((0, 0), (0, 0), (W + 1, W + 1)))        # (N, Cin, L)

    # torch Conv2d weight (Cout,Cin,3,3) -> (Cout, 9*Cin), col = (kh*3+kw)*Cin+cin
    w_mat = jnp.transpose(weight, (0, 2, 3, 1)).reshape(Cout, 9 * Cin)
    w_mat = w_mat.astype(jnp.bfloat16)
    b_col = bias.reshape(Cout, 1).astype(jnp.float32)

    # Precomputed width-boundary masks (row 0: w != 0, row 1: w != W-1).
    col = jnp.arange(HW, dtype=jnp.int32) % W
    masks = jnp.stack([col != 0, col != (W - 1)]).astype(jnp.bfloat16)  # (2, HW)

    kernel = functools.partial(_conv3x3_bias_relu_kernel,
                               H=H, W=W, Cin=Cin, Cout=Cout, B=B)

    out_flat = pl.pallas_call(
        kernel,
        out_shape=jax.ShapeDtypeStruct((N, Cout, HW), jnp.float32),
        grid=(N // B,),
        in_specs=[
            pl.BlockSpec((B, Cin, L), lambda n: (n, 0, 0)),        # B images / step
            pl.BlockSpec((Cout, 9 * Cin), lambda n: (0, 0)),       # weights (resident)
            pl.BlockSpec((Cout, 1), lambda n: (0, 0)),             # bias (resident)
            pl.BlockSpec((2, HW), lambda n: (0, 0)),               # masks (resident)
        ],
        out_specs=pl.BlockSpec((B, Cout, HW), lambda n: (n, 0, 0)),
        scratch_shapes=[pltpu.VMEM((9 * Cin, B * HW), jnp.bfloat16)],
        compiler_params=pltpu.CompilerParams(
            dimension_semantics=("parallel",),
        ),
    )(xg, w_mat, b_col, masks)

    # (N, Cout, H*W) -> (N, Cout, H, W): pure reshape, already NCHW ordered.
    return out_flat.reshape(N, Cout, H, W)


# ----------------------------------------------------------------------------
# JAX equivalent of the wrapped torch module (Conv2d 3x3, pad=1 + ReLU)
# ----------------------------------------------------------------------------
class ConvReLUModule:
    """The concrete inner nn.Module wrapped by ArchModule."""

    def __init__(self, c_in: int, c_out: int, key):
        kw_, kb_ = jax.random.split(key)
        # torch Conv2d weight layout: (Cout, Cin, KH, KW)
        self.weight = jax.random.normal(kw_, (c_out, c_in, 3, 3), jnp.float32) * 0.1
        self.bias = jax.random.normal(kb_, (c_out,), jnp.float32) * 0.1
        self.c_in = c_in
        self.c_out = c_out

    def __call__(self, x_nchw):
        assert x_nchw.shape[1] == self.c_in
        return conv3x3_bias_relu(x_nchw, self.weight, self.bias)


class ArchModule:
    """JAX/Pallas port of generativelib ArchModule: wrapper whose forward() delegates."""
    # TODO(synk): Modules-enum registry / cls_from_dict dynamic class lookup is
    # framework plumbing with no Pallas equivalent; mirrored as plain Python.

    def __init__(self, model_type: str, module):
        self.model_type = model_type
        self.module = module

    def to_state_dict(self):
        return {
            "model_type": self.model_type,
            "module": {"weight": self.module.weight, "bias": self.module.bias},
        }

    def from_state_dict(self, state_dict):
        self.model_type = state_dict["model_type"]
        self.module.weight = state_dict["module"]["weight"]
        self.module.bias = state_dict["module"]["bias"]
        return self

    def forward(self, *args, **kwargs):
        return self.module(*args, **kwargs)

    __call__ = forward


# ----------------------------------------------------------------------------
# Pure-JAX references for correctness checks
# ----------------------------------------------------------------------------
def _reference_f32(x, weight, bias):
    out = jax.lax.conv_general_dilated(
        x, weight, window_strides=(1, 1), padding="SAME",
        dimension_numbers=("NCHW", "OIHW", "NCHW"),
        precision=jax.lax.Precision.HIGHEST)
    return jnp.maximum(out + bias.reshape(1, -1, 1, 1), 0.0)


def _reference_bf16_operands(x, weight, bias):
    # Same math as the kernel: bf16-rounded operands, f32 accumulation.
    xb = x.astype(jnp.bfloat16).astype(jnp.float32)
    wb = weight.astype(jnp.bfloat16).astype(jnp.float32)
    out = jax.lax.conv_general_dilated(
        xb, wb, window_strides=(1, 1), padding="SAME",
        dimension_numbers=("NCHW", "OIHW", "NCHW"),
        precision=jax.lax.Precision.HIGHEST)
    return jnp.maximum(out + bias.reshape(1, -1, 1, 1), 0.0)


if __name__ == "__main__":
    key = jax.random.PRNGKey(0)
    k_x, k_m = jax.random.split(key)

    N, C, H, W = 2, 4, 16, 16
    x = jax.random.normal(k_x, (N, C, H, W), jnp.float32)

    inner = ConvReLUModule(c_in=C, c_out=8, key=k_m)
    arch = ArchModule("CONV_RELU", inner)

    y = jax.block_until_ready(arch(x))
    assert y.shape == (N, 8, H, W)

    # Tight check: reference using the same bf16-rounded operands (f32 accumulation).
    y_ref = _reference_bf16_operands(x, inner.weight, inner.bias)
    assert jnp.allclose(y, y_ref, atol=2e-3, rtol=2e-3), "mismatch vs bf16-operand reference"

    # Loose check vs full-f32 reference (bounds the bf16 input-rounding error).
    y_ref32 = _reference_f32(x, inner.weight, inner.bias)
    assert jnp.allclose(y, y_ref32, atol=5e-2, rtol=5e-2), "mismatch vs f32 reference"

    print("KERNEL_OK")
</pallas_src>

<mosaic_0001>
module attributes {stable_mosaic.version = 11 : i64} {
  func.func @_conv3x3_bias_relu_kernel(%arg0: i32, %arg1: memref<1x4x290xbf16, #tpu.memory_space<vmem>>, %arg2: memref<8x36xbf16, #tpu.memory_space<vmem>>, %arg3: memref<8x1xf32, #tpu.memory_space<vmem>>, %arg4: memref<2x256xbf16, #tpu.memory_space<vmem>>, %arg5: memref<1x8x256xf32, #tpu.memory_space<vmem>>, %arg6: memref<36x256xbf16, #tpu.memory_space<vmem>>) attributes {dimension_semantics = [#tpu.dimension_semantics<parallel>], iteration_bounds = array<i64: 2>, scalar_prefetch = 0 : i64, scratch_operands = 1 : i64, tpu.core_type = #tpu.core_type<tc>, window_params = [{transform_indices = @transform_0, window_bounds = array<i64: 1, 4, 290>}, {pipeline_mode = #tpu.pipeline_mode<synchronous>, transform_indices = @transform_1, window_bounds = array<i64: 8, 36>}, {pipeline_mode = #tpu.pipeline_mode<synchronous>, transform_indices = @transform_2, window_bounds = array<i64: 8, 1>}, {pipeline_mode = #tpu.pipeline_mode<synchronous>, transform_indices = @transform_3, window_bounds = array<i64: 2, 256>}, {transform_indices = @transform_4, window_bounds = array<i64: 1, 8, 256>}]} {
    %c0 = arith.constant 0 : index
    %c0_0 = arith.constant 0 : index
    %0 = vector.load %arg4[%c0, %c0_0] : memref<2x256xbf16, #tpu.memory_space<vmem>>, vector<1x256xbf16>
    %c1 = arith.constant 1 : index
    %c0_1 = arith.constant 0 : index
    %1 = vector.load %arg4[%c1, %c0_1] : memref<2x256xbf16, #tpu.memory_space<vmem>>, vector<1x256xbf16>
    %c0_2 = arith.constant 0 : index
    %c0_3 = arith.constant 0 : index
    %c0_4 = arith.constant 0 : index
    %2 = vector.load %arg1[%c0_2, %c0_3, %c0_4] : memref<1x4x290xbf16, #tpu.memory_space<vmem>>, vector<1x4x256xbf16>
    %3 = vector.shape_cast %2 : vector<1x4x256xbf16> to vector<4x256xbf16>
    %4 = vector.broadcast %0 : vector<1x256xbf16> to vector<4x256xbf16>
    %5 = arith.mulf %3, %4 : vector<4x256xbf16>
    %c0_5 = arith.constant 0 : index
    %c0_6 = arith.constant 0 : index
    %6 = vector.load %arg6[%c0_5, %c0_6] : memref<36x256xbf16, #tpu.memory_space<vmem>>, vector<4x256xbf16>
    tpu.vector_store %arg6[%c0_5, %c0_6], %5 {strides = array<i32>} : memref<36x256xbf16, #tpu.memory_space<vmem>>, vector<4x256xbf16>,
    %c0_7 = arith.constant 0 : index
    %c0_8 = arith.constant 0 : index
    %c1_9 = arith.constant 1 : index
    %7 = vector.load %arg1[%c0_7, %c0_8, %c1_9] : memref<1x4x290xbf16, #tpu.memory_space<vmem>>, vector<1x4x256xbf16>
    %8 = vector.shape_cast %7 : vector<1x4x256xbf16> to vector<4x256xbf16>
    %c4 = arith.constant 4 : index
    %c0_10 = arith.constant 0 : index
    %9 = vector.load %arg6[%c4, %c0_10] : memref<36x256xbf16, #tpu.memory_space<vmem>>, vector<4x256xbf16>
    tpu.vector_store %arg6[%c4, %c0_10], %8 {strides = array<i32>} : memref<36x256xbf16, #tpu.memory_space<vmem>>, vector<4x256xbf16>,
    %c0_11 = arith.constant 0 : index
    %c0_12 = arith.constant 0 : index
    %c2 = arith.constant 2 : index
    %10 = vector.load %arg1[%c0_11, %c0_12, %c2] : memref<1x4x290xbf16, #tpu.memory_space<vmem>>, vector<1x4x256xbf16>
    %11 = vector.shape_cast %10 : vector<1x4x256xbf16> to vector<4x256xbf16>
    %12 = vector.broadcast %1 : vector<1x256xbf16> to vector<4x256xbf16>
    %13 = arith.mulf %11, %12 : vector<4x256xbf16>
    %c8 = arith.constant 8 : index
    %c0_13 = arith.constant 0 : index
    %14 = vector.load %arg6[%c8, %c0_13] : memref<36x256xbf16, #tpu.memory_space<vmem>>, vector<4x256xbf16>
    tpu.vector_store %arg6[%c8, %c0_13], %13 {strides = array<i32>} : memref<36x256xbf16, #tpu.memory_space<vmem>>, vector<4x256xbf16>,
    %c0_14 = arith.constant 0 : index
    %c0_15 = arith.constant 0 : index
    %c16 = arith.constant 16 : index
    %15 = vector.load %arg1[%c0_14, %c0_15, %c16] : memref<1x4x290xbf16, #tpu.memory_space<vmem>>, vector<1x4x256xbf16>
    %16 = vector.shape_cast %15 : vector<1x4x256xbf16> to vector<4x256xbf16>
    %17 = vector.broadcast %0 : vector<1x256xbf16> to vector<4x256xbf16>
    %18 = arith.mulf %16, %17 : vector<4x256xbf16>
    %c12 = arith.constant 12 : index
    %c0_16 = arith.constant 0 : index
    %19 = vector.load %arg6[%c12, %c0_16] : memref<36x256xbf16, #tpu.memory_space<vmem>>, vector<4x256xbf16>
    tpu.vector_store %arg6[%c12, %c0_16], %18 {strides = array<i32>} : memref<36x256xbf16, #tpu.memory_space<vmem>>, vector<4x256xbf16>,
    %c0_17 = arith.constant 0 : index
    %c0_18 = arith.constant 0 : index
    %c17 = arith.constant 17 : index
    %20 = vector.load %arg1[%c0_17, %c0_18, %c17] : memref<1x4x290xbf16, #tpu.memory_space<vmem>>, vector<1x4x256xbf16>
    %21 = vector.shape_cast %20 : vector<1x4x256xbf16> to vector<4x256xbf16>
    %c16_19 = arith.constant 16 : index
    %c0_20 = arith.constant 0 : index
    %22 = vector.load %arg6[%c16_19, %c0_20] : memref<36x256xbf16, #tpu.memory_space<vmem>>, vector<4x256xbf16>
    tpu.vector_store %arg6[%c16_19, %c0_20], %21 {strides = array<i32>} : memref<36x256xbf16, #tpu.memory_space<vmem>>, vector<4x256xbf16>,
    %c0_21 = arith.constant 0 : index
    %c0_22 = arith.constant 0 : index
    %c18 = arith.constant 18 : index
    %23 = vector.load %arg1[%c0_21, %c0_22, %c18] : memref<1x4x290xbf16, #tpu.memory_space<vmem>>, vector<1x4x256xbf16>
    %24 = vector.shape_cast %23 : vector<1x4x256xbf16> to vector<4x256xbf16>
    %25 = vector.broadcast %1 : vector<1x256xbf16> to vector<4x256xbf16>
    %26 = arith.mulf %24, %25 : vector<4x256xbf16>
    %c20 = arith.constant 20 : index
    %c0_23 = arith.constant 0 : index
    %27 = vector.load %arg6[%c20, %c0_23] : memref<36x256xbf16, #tpu.memory_space<vmem>>, vector<4x256xbf16>
    tpu.vector_store %arg6[%c20, %c0_23], %26 {strides = array<i32>} : memref<36x256xbf16, #tpu.memory_space<vmem>>, vector<4x256xbf16>,
    %c0_24 = arith.constant 0 : index
    %c0_25 = arith.constant 0 : index
    %c32 = arith.constant 32 : index
    %28 = vector.load %arg1[%c0_24, %c0_25, %c32] : memref<1x4x290xbf16, #tpu.memory_space<vmem>>, vector<1x4x256xbf16>
    %29 = vector.shape_cast %28 : vector<1x4x256xbf16> to vector<4x256xbf16>
    %30 = vector.broadcast %0 : vector<1x256xbf16> to vector<4x256xbf16>
    %31 = arith.mulf %29, %30 : vector<4x256xbf16>
    %c24 = arith.constant 24 : index
    %c0_26 = arith.constant 0 : index
    %32 = vector.load %arg6[%c24, %c0_26] : memref<36x256xbf16, #tpu.memory_space<vmem>>, vector<4x256xbf16>
    tpu.vector_store %arg6[%c24, %c0_26], %31 {strides = array<i32>} : memref<36x256xbf16, #tpu.memory_space<vmem>>, vector<4x256xbf16>,
    %c0_27 = arith.constant 0 : index
    %c0_28 = arith.constant 0 : index
    %c33 = arith.constant 33 : index
    %33 = vector.load %arg1[%c0_27, %c0_28, %c33] : memref<1x4x290xbf16, #tpu.memory_space<vmem>>, vector<1x4x256xbf16>
    %34 = vector.shape_cast %33 : vector<1x4x256xbf16> to vector<4x256xbf16>
    %c28 = arith.constant 28 : index
    %c0_29 = arith.constant 0 : index
    %35 = vector.load %arg6[%c28, %c0_29] : memref<36x256xbf16, #tpu.memory_space<vmem>>, vector<4x256xbf16>
    tpu.vector_store %arg6[%c28, %c0_29], %34 {strides = array<i32>} : memref<36x256xbf16, #tpu.memory_space<vmem>>, vector<4x256xbf16>,
    %c0_30 = arith.constant 0 : index
    %c0_31 = arith.constant 0 : index
    %c34 = arith.constant 34 : index
    %36 = vector.load %arg1[%c0_30, %c0_31, %c34] : memref<1x4x290xbf16, #tpu.memory_space<vmem>>, vector<1x4x256xbf16>
    %37 = vector.shape_cast %36 : vector<1x4x256xbf16> to vector<4x256xbf16>
    %38 = vector.broadcast %1 : vector<1x256xbf16> to vector<4x256xbf16>
    %39 = arith.mulf %37, %38 : vector<4x256xbf16>
    %c32_32 = arith.constant 32 : index
    %c0_33 = arith.constant 0 : index
    %40 = vector.load %arg6[%c32_32, %c0_33] : memref<36x256xbf16, #tpu.memory_space<vmem>>, vector<4x256xbf16>
    tpu.vector_store %arg6[%c32_32, %c0_33], %39 {strides = array<i32>} : memref<36x256xbf16, #tpu.memory_space<vmem>>, vector<4x256xbf16>,
    %c0_34 = arith.constant 0 : index
    %c0_35 = arith.constant 0 : index
    %41 = vector.load %arg2[%c0_34, %c0_35] : memref<8x36xbf16, #tpu.memory_space<vmem>>, vector<8x36xbf16>
    %c0_36 = arith.constant 0 : index
    %c0_37 = arith.constant 0 : index
    %42 = vector.load %arg6[%c0_36, %c0_37] : memref<36x256xbf16, #tpu.memory_space<vmem>>, vector<36x256xbf16>
    %cst = arith.constant dense<0.000000e+00> : vector<8x256xf32>
    %43 = tpu.matmul %41, %42, %cst {dimension_numbers = #tpu.dot_dimension_numbers<[1], [0], [0], [1], [0, 0, 1, 1], [], []>} : vector<8x36xbf16>, vector<36x256xbf16>, vector<8x256xf32> -> vector<8x256xf32>
    %c0_38 = arith.constant 0 : index
    %c0_39 = arith.constant 0 : index
    %44 = vector.load %arg3[%c0_38, %c0_39] : memref<8x1xf32, #tpu.memory_space<vmem>>, vector<8x1xf32>
    %45 = vector.broadcast %44 : vector<8x1xf32> to vector<8x256xf32>
    %46 = arith.addf %43, %45 : vector<8x256xf32>
    %cst_40 = arith.constant 0.000000e+00 : f32
    %47 = vector.broadcast %cst_40 : f32 to vector<8x256xf32>
    %48 = arith.maximumf %46, %47 : vector<8x256xf32>
    %c0_41 = arith.constant 0 : index
    %c0_42 = arith.constant 0 : index
    %c0_43 = arith.constant 0 : index
    %49 = vector.load %arg5[%c0_41, %c0_42, %c0_43] : memref<1x8x256xf32, #tpu.memory_space<vmem>>, vector<1x8x256xf32>
    %50 = vector.shape_cast %49 : vector<1x8x256xf32> to vector<8x256xf32>
    %51 = vector.shape_cast %48 : vector<8x256xf32> to vector<1x8x256xf32>
    tpu.vector_store %arg5[%c0_41, %c0_42, %c0_43], %51 {strides = array<i32>} : memref<1x8x256xf32, #tpu.memory_space<vmem>>, vector<1x8x256xf32>,
    return
  }
  func.func @transform_0(%arg0: i32) -> (i32, i32, i32) {
    %c0_i32 = arith.constant 0 : i32
    %c0_i32_0 = arith.constant 0 : i32
    %c0_i32_1 = arith.constant 0 : i32
    return %arg0, %c0_i32, %c0_i32_0 : i32, i32, i32
  }
  func.func @transform_1(%arg0: i32) -> (i32, i32) {
    %c0_i32 = arith.constant 0 : i32
    %c0_i32_0 = arith.constant 0 : i32
    %c0_i32_1 = arith.constant 0 : i32
    return %c0_i32, %c0_i32_0 : i32, i32
  }
  func.func @transform_2(%arg0: i32) -> (i32, i32) {
    %c0_i32 = arith.constant 0 : i32
    %c0_i32_0 = arith.constant 0 : i32
    %c0_i32_1 = arith.constant 0 : i32
    return %c0_i32, %c0_i32_0 : i32, i32
  }
  func.func @transform_3(%arg0: i32) -> (i32, i32) {
    %c0_i32 = arith.constant 0 : i32
    %c0_i32_0 = arith.constant 0 : i32
    %c0_i32_1 = arith.constant 0 : i32
    return %c0_i32, %c0_i32_0 : i32, i32
  }
  func.func @transform_4(%arg0: i32) -> (i32, i32, i32) {
    %c0_i32 = arith.constant 0 : i32
    %c0_i32_0 = arith.constant 0 : i32
    %c0_i32_1 = arith.constant 0 : i32
    return %arg0, %c0_i32, %c0_i32_0 : i32, i32, i32
  }
}

</mosaic_0001>

<llo_original>
// kernel: conv3x3_bias_relu.1
$region0: #{conv3x3_bias_relu.1}
  #allocation0 [shape = 'u32[]', space=smem, size = 0x4, offset = 0x4, fixed_abs, tag = 'smem constant byte address 0x4 - core index']
  #allocation1 [shape = 'u32[144,128]{1,0:T(1,128)}', space=vmem, size = 0x12000, scoped, tag = 'internal scratch']
  #allocation2 [shape = 'bf16[36,256]{1,0:T(8,128)(2,1)}', space=vmem, size = 0x5000, scoped, tag = 'scratch operand']
  %s0 = inlined_call_operand.vmem [shape: bf16[2,4,290], index: 0, kind: input, shape index: {}]
  %s1 = inlined_call_operand.vmem [shape: bf16[8,36], index: 1, kind: input, shape index: {}]
  %s2 = inlined_call_operand.vmem [shape: f32[8,1], index: 2, kind: input, shape index: {}]
  %s3 = inlined_call_operand.vmem [shape: bf16[2,256], index: 3, kind: input, shape index: {}]
  %s4 = inlined_call_operand.vmem [shape: f32[2,8,256], index: 4, kind: output, shape index: {}]
  %s5 = sld [smem:[#allocation0]]
  $region49: #{conv3x3_bias_relu.1} parent=0
    _
  %s7 = ssub.s32 1, %s5
  %s8 = scalar_select 0, %s7, %s5
  loop: start=0, step=1, limit=4
  $region2: #{conv3x3_bias_relu.1} parent=0 // loop_pre_header
    _
  $region3: #{conv3x3_bias_relu.1} parent=0 // loop_header
    %s10 = sphi 0, %s14
    %p11 = scmp.ge.s32.totalorder %s10, 4
    %s20 = sphi 0, %s22
    %s23 = sphi 0, %s20
    %s24 = sphi 0, %s23
    %s40 = sphi 0, %s24
    %s44 = sphi 0, %s44
    %s46 = sphi 0, %s44
    %s47 = sphi 0, %s46
    %s61 = sphi 0, %s47
    %s65 = sphi 0, %s65
    %s67 = sphi 0, %s65
    %s68 = sphi 0, %s67
    %s82 = sphi 0, %s68
    %s86 = sphi 0, %s86
    %s88 = sphi 0, %s86
    %s89 = sphi 0, %s88
    %s103 = sphi 0, %s89
    %s109 = sphi 0, %s111
    %s112 = sphi 0, %s109
    %s113 = sphi 0, %s112
    %s129 = sphi 0, %s113
  $region4: #{conv3x3_bias_relu.1} parent=0 // loop_header_branch
    %13 = sbr.rel (%p11) target = $region8
  $region5: #{conv3x3_bias_relu.1} parent=0 // loop_body
    %s15 = ssub.s32 %s10, 1
    %s16 = ssub.s32 %s10, 2
    %s17 = sadd.s32 %s10, 1
    %s18 = ssub.s32 %s10, %s17
    %p19 = scmp.eq.s32.totalorder %s18, 0
    %s21 = sadd.s32 %s20, 1
    %s22 = scalar_select %p19, %s20, %s21
    %p25 = pneg %p19
    %p26 = scmp.eq.s32.totalorder %s10, 1
    %p27 = por %p25, %p26
    %p28 = scmp.ne.s32.totalorder %s20, %s23
    %p29 = scmp.eq.s32.totalorder %s10, 0
    %p30 = por %p28, %p29
    %p31 = scmp.ne.s32.totalorder %s20, %s23
    %p32 = scmp.eq.s32.totalorder %s15, 1
    %p33 = por %p31, %p32
    %p34 = scmp.ne.s32.totalorder %s23, %s24
    %p35 = scmp.eq.s32.totalorder %s15, 0
    %p36 = por %p34, %p35
    %p37 = scmp.ne.s32.totalorder %s23, %s24
    %p38 = scmp.eq.s32.totalorder %s16, 1
    %p39 = por %p37, %p38
    %p41 = scmp.ne.s32.totalorder %s24, %s40
    %p42 = scmp.eq.s32.totalorder %s16, 0
    %p43 = por %p41, %p42
    %s45 = sadd.s32 %s44, 1
    %p48 = scmp.eq.s32.totalorder %s10, 1
    %p49 = scmp.ne.s32.totalorder %s44, %s46
    %p50 = scmp.eq.s32.totalorder %s10, 0
    %p51 = por %p49, %p50
    %p52 = scmp.ne.s32.totalorder %s44, %s46
    %p53 = scmp.eq.s32.totalorder %s15, 1
    %p54 = por %p52, %p53
    %p55 = scmp.ne.s32.totalorder %s46, %s47
    %p56 = scmp.eq.s32.totalorder %s15, 0
    %p57 = por %p55, %p56
    %p58 = scmp.ne.s32.totalorder %s46, %s47
    %p59 = scmp.eq.s32.totalorder %s16, 1
    %p60 = por %p58, %p59
    %p62 = scmp.ne.s32.totalorder %s47, %s61
    %p63 = scmp.eq.s32.totalorder %s16, 0
    %p64 = por %p62, %p63
    %s66 = sadd.s32 %s65, 1
    %p69 = scmp.eq.s32.totalorder %s10, 1
    %p70 = scmp.ne.s32.totalorder %s65, %s67
    %p71 = scmp.eq.s32.totalorder %s10, 0
    %p72 = por %p70, %p71
    %p73 = scmp.ne.s32.totalorder %s65, %s67
    %p74 = scmp.eq.s32.totalorder %s15, 1
    %p75 = por %p73, %p74
    %p76 = scmp.ne.s32.totalorder %s67, %s68
    %p77 = scmp.eq.s32.totalorder %s15, 0
    %p78 = por %p76, %p77
    %p79 = scmp.ne.s32.totalorder %s67, %s68
    %p80 = scmp.eq.s32.totalorder %s16, 1
    %p81 = por %p79, %p80
    %p83 = scmp.ne.s32.totalorder %s68, %s82
    %p84 = scmp.eq.s32.totalorder %s16, 0
    %p85 = por %p83, %p84
    %s87 = sadd.s32 %s86, 1
    %p90 = scmp.eq.s32.totalorder %s10, 1
    %p91 = scmp.ne.s32.totalorder %s86, %s88
    %p92 = scmp.eq.s32.totalorder %s10, 0
    %p93 = por %p91, %p92
    %p94 = scmp.ne.s32.totalorder %s86, %s88
    %p95 = scmp.eq.s32.totalorder %s15, 1
    %p96 = por %p94, %p95
    %p97 = scmp.ne.s32.totalorder %s88, %s89
    %p98 = scmp.eq.s32.totalorder %s15, 0
    %p99 = por %p97, %p98
    %p100 = scmp.ne.s32.totalorder %s88, %s89
    %p101 = scmp.eq.s32.totalorder %s16, 1
    %p102 = por %p100, %p101
    %p104 = scmp.ne.s32.totalorder %s89, %s103
    %p105 = scmp.eq.s32.totalorder %s16, 0
    %p106 = por %p104, %p105
    %s107 = ssub.s32 %s10, %s17
    %p108 = scmp.eq.s32.totalorder %s107, 0
    %s110 = sadd.s32 %s109, 1
    %s111 = scalar_select %p108, %s109, %s110
    %p114 = pneg %p108
    %p115 = scmp.eq.s32.totalorder %s10, 1
    %p116 = por %p114, %p115
    %p117 = scmp.ne.s32.totalorder %s109, %s112
    %p118 = scmp.eq.s32.totalorder %s10, 0
    %p119 = por %p117, %p118
    %p120 = scmp.ne.s32.totalorder %s109, %s112
    %p121 = scmp.eq.s32.totalorder %s15, 1
    %p122 = por %p120, %p121
    %p123 = scmp.ne.s32.totalorder %s112, %s113
    %p124 = scmp.eq.s32.totalorder %s15, 0
    %p125 = por %p123, %p124
    %p126 = scmp.ne.s32.totalorder %s112, %s113
    %p127 = scmp.eq.s32.totalorder %s16, 1
    %p128 = por %p126, %p127
    %p130 = scmp.ne.s32.totalorder %s113, %s129
    %p131 = scmp.eq.s32.totalorder %s16, 0
    %p132 = por %p130, %p131
    %p133 = scmp.le.s32.totalorder 1, %s10
    %p134 = scmp.lt.s32.totalorder %s10, 3
    %p135 = pnand %p133, %p134
    %p136 = pneg %p135
    // Predicated region
    $region9: #{conv3x3_bias_relu.1} parent=5 // pred_check
      _
    $region10: #{conv3x3_bias_relu.1} parent=5 // pred_check_branch
      %138 = sbr.rel (%p135) target = $region12
    $region11: #{conv3x3_bias_relu.1} parent=5 // pred_region
      %s139 = ssub.s32 %s10, 1
      // Predicated region
      $region13: #{conv3x3_bias_relu.1} parent=11 // pred_check
        %p140 = pneg %p57
      $region14: #{conv3x3_bias_relu.1} parent=11 // pred_check_branch
        %142 = sbr.rel (%p140) target = $region16
      $region15: #{conv3x3_bias_relu.1} parent=11 // pred_region
        _
      $region16: #{conv3x3_bias_relu.1} parent=11 // pred_fallthru
        _
      // Predicated region
      $region17: #{conv3x3_bias_relu.1} parent=11 // pred_check
        %p143 = pneg %p78
      $region18: #{conv3x3_bias_relu.1} parent=11 // pred_check_branch
        %145 = sbr.rel (%p143) target = $region20
      $region19: #{conv3x3_bias_relu.1} parent=11 // pred_region
        _
      $region20: #{conv3x3_bias_relu.1} parent=11 // pred_fallthru
        _
      // Predicated region
      $region21: #{conv3x3_bias_relu.1} parent=11 // pred_check
        %p146 = pneg %p99
      $region22: #{conv3x3_bias_relu.1} parent=11 // pred_check_branch
        %148 = sbr.rel (%p146) target = $region24
      $region23: #{conv3x3_bias_relu.1} parent=11 // pred_region
        _
      $region24: #{conv3x3_bias_relu.1} parent=11 // pred_fallthru
        _
    $region12: #{conv3x3_bias_relu.1} parent=5 // pred_fallthru
      _
    %p149 = scmp.lt.s32.totalorder %s10, 2
    // Predicated region
    $region25: #{conv3x3_bias_relu.1} parent=5 // pred_check
      %p150 = pneg %p149
    $region26: #{conv3x3_bias_relu.1} parent=5 // pred_check_branch
      %152 = sbr.rel (%p150) target = $region28
    $region27: #{conv3x3_bias_relu.1} parent=5 // pred_region
      // Predicated region
      $region29: #{conv3x3_bias_relu.1} parent=27 // pred_check
        %p153 = pneg %p30
      $region30: #{conv3x3_bias_relu.1} parent=27 // pred_check_branch
        %155 = sbr.rel (%p153) target = $region32
      $region31: #{conv3x3_bias_relu.1} parent=27 // pred_region
        %p156 = scmp.lt.s32.totalorder %s10, 1
        %s157 = scalar_select %p156, %s10, 1
        %s158 = smul.addr %s157, 3
        %s159 = smul.addr %s158, 2
        %s160 = scalar_lea.vmem %s0, %s159
      $region32: #{conv3x3_bias_relu.1} parent=27 // pred_fallthru
        _
    $region28: #{conv3x3_bias_relu.1} parent=5 // pred_fallthru
      _
    %p161 = scmp.le.s32.totalorder 1, %s10
    %p162 = scmp.lt.s32.totalorder %s10, 3
    %p163 = pnand %p161, %p162
    %p164 = pneg %p163
    // Predicated region
    $region33: #{conv3x3_bias_relu.1} parent=5 // pred_check
      _
    $region34: #{conv3x3_bias_relu.1} parent=5 // pred_check_branch
      %166 = sbr.rel (%p163) target = $region36
    $region35: #{conv3x3_bias_relu.1} parent=5 // pred_region
      %s167 = ssub.s32 %s10, 1
      %p168 = scmp.lt.s32.totalorder %s15, 1
      %s169 = scalar_select %p168, %s15, 1
      %s170 = smul.addr %s169, 3
      %s171 = smul.addr %s170, 2
      %s172 = scalar_lea.vmem %s0, %s171
      %p173 = pneg %p36
      %p174 = pneg %p33
      %p175 = pneg %p57
      %p176 = pneg %p54
      %p177 = pneg %p78
      %p178 = pneg %p75
      %p179 = pneg %p99
      %p180 = pneg %p96
      %p181 = pneg %p125
      %p182 = pneg %p122
      %p183 = scmp.lt.s32.totalorder %s15, 1
      %s184 = scalar_select %p183, %s15, 1
      %s185 = smul.addr %s184, 2
      %s186 = smul.addr %s185, 8
      %s187 = scalar_lea.vmem %s4, %s186
      %p188 = scmp.lt.s32.totalorder %s15, 1
      %s189 = scalar_select %p188, %s15, 1
      %s190 = smul.addr %s189, 3
      %s191 = smul.addr %s190, 2
      %s192 = scalar_lea.vmem %s0, %s191
      %p193 = scmp.lt.s32.totalorder %s15, 1
      %s194 = scalar_select %p193, %s15, 1
      %s195 = smul.addr %s194, 2
      %s196 = smul.addr %s195, 8
      %s197 = scalar_lea.vmem %s4, %s196
      %v199 = vld [vmem:[%s3] sm:$0x3]
      %v200 = vld [vmem:[%s192] sm:$0xf]
      %v203 = vunpack.c.l.s4 1966171168
      %v204 = vunpack.c.0.s8 %v203
      %v205 = vlaneseq
      %v206 = vshrl.u32 %v205, 7
      %v207 = vsub.s32 %v204, %v206
      %v208 = vrot.slane %v199, %v207
      %v209 = vcombine.high %v208, %v208
      %v211 = vunpack.c.l.s4 1966171168
      %v212 = vunpack.c.0.s8 %v211
      %v213 = vlaneseq
      %v214 = vshrl.u32 %v213, 7
      %v215 = vsub.s32 %v212, %v214
      %v216 = vrot.slane %v208, %v215
      %v218 = vunpack.c.l.s4 1966171168
      %v219 = vunpack.c.0.s8 %v218
      %v220 = vlaneseq
      %v221 = vshrl.u32 %v220, 7
      %v222 = vsub.s32 %v219, %v221
      %v223 = vrot.slane %v209, %v222
      %v225 = vpack.i.b16 %v216, %v216
      %v227 = vlaneseq
      %v228 = vshrl.u32 %v227, 7
      %v229 = vsub.s32 0, %v228
      %v230 = vrot.slane %v225, %v229
      %v232 = vpack.i.b16 %v223, %v223
      %v234 = vlaneseq
      %v235 = vshrl.u32 %v234, 7
      %v236 = vsub.s32 0, %v235
      %v237 = vrot.slane %v232, %v236
      %v240 = vcombine.low %v230, %v237
      %v242 = vunpack.c.l.s4 1983009808
      %v243 = vunpack.c.0.s8 %v242
      %v244 = vlaneseq
      %v245 = vshrl.u32 %v244, 7
      %v246 = vsub.s32 %v243, %v245
      %v247 = vrot.slane %v240, %v246
      %v249 = vmul.bf16 %v200, %v247
      %v252 = vunpack.c.l.s4 1983009808
      %v253 = vunpack.c.0.s8 %v252
      %v254 = vlaneseq
      %v255 = vshrl.u32 %v254, 7
      %v256 = vsub.s32 %v253, %v255
      %v257 = vrot.slane %v249, %v256
      %259 = vst [vmem:[#allocation2] sm:$0x33] %v257
      %v260 = vld [vmem:[%s192] sm:$0x3f]
      %v262 = vcombine.low %v260, %v260
      %v264 = vunpack.c.l.s4 1983009808
      %v265 = vunpack.c.0.s8 %v264
      %v266 = vlaneseq
      %v267 = vshrl.u32 %v266, 7
      %v268 = vsub.s32 %v265, %v267
      %v269 = vrot.slane %v262, %v268
      %v271 = vunpack.c.l.s4 1983009808
      %v272 = vunpack.c.0.s8 %v271
      %v273 = vlaneseq
      %v274 = vshrl.u32 %v273, 7
      %v275 = vsub.s32 %v272, %v274
      %v276 = vrot.slane %v260, %v275
      %277 = vrot.lane.b32.xlu0 %v269, 127
      %v278 = vpop.permute.xlu0 %277
      %279 = vrot.lane.b32.xlu0 %v276, 127
      %v280 = vpop.permute.xlu0 %279
      %v281 = vrot.slane %v278, 4
      %v282 = vrot.slane %v280, 4
      %vm283 = vcmask 1043456
      %v284 = vsel %vm283, %v281, %v282
      %vm285 = vcmask 1039360
      %v286 = vsel %vm285, %v278, %v284
      %288 = vst [vmem:[#allocation2] sm:$0xcc] %v286
      %v289 = vld [vmem:[%s192] sm:$0x3f]
      %v290 = vshrl.u32 %v216, 16
      %v291 = vpack.i.b16 %v290, %v290
      %v293 = vlaneseq
      %v294 = vshrl.u32 %v293, 7
      %v295 = vsub.s32 0, %v294
      %v296 = vrot.slane %v291, %v295
      %v297 = vshrl.u32 %v223, 16
      %v298 = vpack.i.b16 %v297, %v297
      %v300 = vlaneseq
      %v301 = vshrl.u32 %v300, 7
      %v302 = vsub.s32 0, %v301
      %v303 = vrot.slane %v298, %v302
      %v306 = vcombine.low %v296, %v303
      %v308 = vunpack.c.l.s4 1983009808
      %v309 = vunpack.c.0.s8 %v308
      %v310 = vlaneseq
      %v311 = vshrl.u32 %v310, 7
      %v312 = vsub.s32 %v309, %v311
      %v313 = vrot.slane %v306, %v312
      %314 = vrot.lane.b32.xlu0 %v313, 2
      %v315 = vpop.permute.xlu0 %314
      %v316 = vrot.slane %v315, 6
      %vm317 = vcmask 15360
      %v318 = vsel %vm317, %v316, %v315
      %v320 = vmul.bf16 %v289, %v318
      %v322 = vcombine.high %v320, %v320
      %v324 = vunpack.c.l.s4 1983009808
      %v325 = vunpack.c.0.s8 %v324
      %v326 = vlaneseq
      %v327 = vshrl.u32 %v326, 7
      %v328 = vsub.s32 %v325, %v327
      %v329 = vrot.slane %v320, %v328
      %v331 = vunpack.c.l.s4 1983009808
      %v332 = vunpack.c.0.s8 %v331
      %v333 = vlaneseq
      %v334 = vshrl.u32 %v333, 7
      %v335 = vsub.s32 %v332, %v334
      %v336 = vrot.slane %v322, %v335
      %337 = vrot.lane.b32.xlu0 %v329, 126
      %v338 = vpop.permute.xlu0 %337
      %339 = vrot.lane.b32.xlu0 %v336, 126
      %v340 = vpop.permute.xlu0 %339
      %v341 = vrot.slane %v338, 4
      %v342 = vrot.slane %v340, 4
      %v343 = vsel %vm283, %v341, %v342
      %vm344 = vcmask 1031168
      %v345 = vsel %vm344, %v338, %v343
      %347 = vst [vmem:[#allocation2 + $0x8] sm:$0x33] %v345
      %v348 = vld [vmem:[%s192] sm:$0x3f]
      %349 = vrot.lane.b32.xlu0 %v247, 16
      %v350 = vpop.permute.xlu0 %349
      %v351 = vrot.slane %v350, 6
      %vm352 = vcmask 130048
      %v353 = vsel %vm352, %v351, %v350
      %v355 = vmul.bf16 %v348, %v353
      %v357 = vcombine.low %v355, %v355
      %v359 = vunpack.c.l.s4 1983009808
      %v360 = vunpack.c.0.s8 %v359
      %v361 = vlaneseq
      %v362 = vshrl.u32 %v361, 7
      %v363 = vsub.s32 %v360, %v362
      %v364 = vrot.slane %v357, %v363
      %v366 = vunpack.c.l.s4 1983009808
      %v367 = vunpack.c.0.s8 %v366
      %v368 = vlaneseq
      %v369 = vshrl.u32 %v368, 7
      %v370 = vsub.s32 %v367, %v369
      %v371 = vrot.slane %v355, %v370
      %372 = vrot.lane.b32.xlu0 %v364, 112
      %v373 = vpop.permute.xlu0 %372
      %374 = vrot.lane.b32.xlu0 %v371, 112
      %v375 = vpop.permute.xlu0 %374
      %v376 = vrot.slane %v373, 4
      %v377 = vrot.slane %v375, 4
      %v378 = vsel %vm283, %v376, %v377
      %vm379 = vcmask 916480
      %v380 = vsel %vm379, %v373, %v378
      %382 = vst [vmem:[#allocation2 + $0x8] sm:$0xcc] %v380
      %v383 = vld [vmem:[%s192] sm:$0x3f]
      %v385 = vcombine.high %v383, %v383
      %v387 = vunpack.c.l.s4 1983009808
      %v388 = vunpack.c.0.s8 %v387
      %v389 = vlaneseq
      %v390 = vshrl.u32 %v389, 7
      %v391 = vsub.s32 %v388, %v390
      %v392 = vrot.slane %v383, %v391
      %v394 = vunpack.c.l.s4 1983009808
      %v395 = vunpack.c.0.s8 %v394
      %v396 = vlaneseq
      %v397 = vshrl.u32 %v396, 7
      %v398 = vsub.s32 %v395, %v397
      %v399 = vrot.slane %v385, %v398
      %400 = vrot.lane.b32.xlu0 %v392, 111
      %v401 = vpop.permute.xlu0 %400
      %402 = vrot.lane.b32.xlu0 %v399, 111
      %v403 = vpop.permute.xlu0 %402
      %v404 = vrot.slane %v401, 4
      %v405 = vrot.slane %v403, 4
      %v406 = vsel %vm283, %v404, %v405
      %vm407 = vcmask 908288
      %v408 = vsel %vm407, %v401, %v406
      %410 = vst [vmem:[#allocation2 + $0x10] sm:$0x33] %v408
      %v411 = vld [vmem:[%s192] sm:$0x3f]
      %412 = vrot.lane.b32.xlu0 %v313, 18
      %v413 = vpop.permute.xlu0 %412
      %v414 = vrot.slane %v413, 6
      %vm415 = vcmask 146432
      %v416 = vsel %vm415, %v414, %v413
      %v418 = vmul.bf16 %v411, %v416
      %v420 = vcombine.low %v418, %v418
      %v422 = vunpack.c.l.s4 1983009808
      %v423 = vunpack.c.0.s8 %v422
      %v424 = vlaneseq
      %v425 = vshrl.u32 %v424, 7
      %v426 = vsub.s32 %v423, %v425
      %v427 = vrot.slane %v420, %v426
      %v429 = vunpack.c.l.s4 1983009808
      %v430 = vunpack.c.0.s8 %v429
      %v431 = vlaneseq
      %v432 = vshrl.u32 %v431, 7
      %v433 = vsub.s32 %v430, %v432
      %v434 = vrot.slane %v418, %v433
      %435 = vrot.lane.b32.xlu0 %v427, 110
      %v436 = vpop.permute.xlu0 %435
      %437 = vrot.lane.b32.xlu0 %v434, 110
      %v438 = vpop.permute.xlu0 %437
      %v439 = vrot.slane %v436, 4
      %v440 = vrot.slane %v438, 4
      %v441 = vsel %vm283, %v439, %v440
      %vm442 = vcmask 900096
      %v443 = vsel %vm442, %v436, %v441
      %445 = vst [vmem:[#allocation2 + $0x10] sm:$0xcc] %v443
      %v446 = vld [vmem:[%s192] sm:$0x3f]
      %447 = vrot.lane.b32.xlu0 %v247, 32
      %v448 = vpop.permute.xlu0 %447
      %v449 = vrot.slane %v448, 6
      %vm450 = vcmask 261120
      %v451 = vsel %vm450, %v449, %v448
      %v453 = vmul.bf16 %v446, %v451
      %v455 = vcombine.high %v453, %v453
      %v457 = vunpack.c.l.s4 1983009808
      %v458 = vunpack.c.0.s8 %v457
      %v459 = vlaneseq
      %v460 = vshrl.u32 %v459, 7
      %v461 = vsub.s32 %v458, %v460
      %v462 = vrot.slane %v453, %v461
      %v464 = vunpack.c.l.s4 1983009808
      %v465 = vunpack.c.0.s8 %v464
      %v466 = vlaneseq
      %v467 = vshrl.u32 %v466, 7
      %v468 = vsub.s32 %v465, %v467
      %v469 = vrot.slane %v455, %v468
      %470 = vrot.lane.b32.xlu0 %v462, 96
      %v471 = vpop.permute.xlu0 %470
      %472 = vrot.lane.b32.xlu0 %v469, 96
      %v473 = vpop.permute.xlu0 %472
      %v474 = vrot.slane %v471, 4
      %v475 = vrot.slane %v473, 4
      %v476 = vsel %vm283, %v474, %v475
      %vm477 = vcmask 785408
      %v478 = vsel %vm477, %v471, %v476
      %480 = vst [vmem:[#allocation2 + $0x18] sm:$0x33] %v478
      %v481 = vld [vmem:[%s192] sm:$0x3f]
      %v483 = vcombine.low %v481, %v481
      %v485 = vunpack.c.l.s4 1983009808
      %v486 = vunpack.c.0.s8 %v485
      %v487 = vlaneseq
      %v488 = vshrl.u32 %v487, 7
      %v489 = vsub.s32 %v486, %v488
      %v490 = vrot.slane %v483, %v489
      %v492 = vunpack.c.l.s4 1983009808
      %v493 = vunpack.c.0.s8 %v492
      %v494 = vlaneseq
      %v495 = vshrl.u32 %v494, 7
      %v496 = vsub.s32 %v493, %v495
      %v497 = vrot.slane %v481, %v496
      %498 = vrot.lane.b32.xlu0 %v490, 95
      %v499 = vpop.permute.xlu0 %498
      %500 = vrot.lane.b32.xlu0 %v497, 95
      %v501 = vpop.permute.xlu0 %500
      %v502 = vrot.slane %v499, 4
      %v503 = vrot.slane %v501, 4
      %v504 = vsel %vm283, %v502, %v503
      %vm505 = vcmask 777216
      %v506 = vsel %vm505, %v499, %v504
      %508 = vst [vmem:[#allocation2 + $0x18] sm:$0xcc] %v506
      %v509 = vld [vmem:[%s192] sm:$0x3f]
      %510 = vrot.lane.b32.xlu0 %v313, 34
      %v511 = vpop.permute.xlu0 %510
      %v512 = vrot.slane %v511, 6
      %vm513 = vcmask 277504
      %v514 = vsel %vm513, %v512, %v511
      %v516 = vmul.bf16 %v509, %v514
      %v518 = vcombine.high %v516, %v516
      %v520 = vunpack.c.l.s4 1983009808
      %v521 = vunpack.c.0.s8 %v520
      %v522 = vlaneseq
      %v523 = vshrl.u32 %v522, 7
      %v524 = vsub.s32 %v521, %v523
      %v525 = vrot.slane %v516, %v524
      %v527 = vunpack.c.l.s4 1983009808
      %v528 = vunpack.c.0.s8 %v527
      %v529 = vlaneseq
      %v530 = vshrl.u32 %v529, 7
      %v531 = vsub.s32 %v528, %v530
      %v532 = vrot.slane %v518, %v531
      %533 = vrot.lane.b32.xlu0 %v525, 94
      %v534 = vpop.permute.xlu0 %533
      %535 = vrot.lane.b32.xlu0 %v532, 94
      %v536 = vpop.permute.xlu0 %535
      %v537 = vrot.slane %v534, 4
      %v538 = vrot.slane %v536, 4
      %v539 = vsel %vm283, %v537, %v538
      %vm540 = vcmask 769024
      %v541 = vsel %vm540, %v534, %v539
      %543 = vst [vmem:[#allocation2 + $0x20] sm:$0x33] %v541
      %v544 = vld [vmem:[%s1] sm:$0xf]
      %v545 = vld [vmem:[#allocation2] sm:$0xff]
      %v546 = vld [vmem:[#allocation2 + $0x8] sm:$0xff]
      %v547 = vld [vmem:[#allocation2 + $0x10] sm:$0xff]
      %v548 = vld [vmem:[#allocation2 + $0x18] sm:$0xff]
      %v549 = vld [vmem:[#allocation2 + $0x20] sm:$0x33]
      %v550 = vld [vmem:[%s2] sm:$0xff]
      %552 = vset.pattern.permute.xlu0 0
      %553 = vperm.xlu0 %552, %v550
      %v554 = vpop.permute.xlu0 %553
      %v561 = vunpack.c.l.b16 %v545
      %v562 = vunpack.c.h.b16 %v545
      %v563 = vunpack.c.l.b16 %v546
      %v564 = vunpack.c.h.b16 %v546
      %v565 = vunpack.c.l.b16 %v547
      %v566 = vunpack.c.h.b16 %v547
      %v567 = vunpack.c.l.b16 %v548
      %v568 = vunpack.c.h.b16 %v548
      %v569 = vunpack.c.l.b16 %v549
      %v570 = vunpack.c.h.b16 %v549
      %v571 = vpack.c.b16 %v563, %v561
      %v572 = vpack.c.b16 %v564, %v562
      %v573 = vpack.c.b16 %v567, %v565
      %v574 = vpack.c.b16 %v568, %v566
      %v575 = vpack.c.b16 %v569, %v569
      %v576 = vpack.c.b16 %v570, %v570
      %vm581 = vcmask 293888
      %v583 = vsel %vm581, %v544, 0
      %vm585 = vcmask 1041408
      %v587 = vsel %vm585, %v575, 0
      %v590 = vsel %vm585, %v576, 0
      %592 = vmatprep.subr.bf16.mxu0 0
      %593 = vmatpush1.bf16.msra.mxu0 0
      %594 = vmatprep.subr.bf16.mxu0 0
      %595 = vmatpush1.bf16.msra.mxu0 0
      %596 = vmatprep.subr.bf16.mxu0 0
      %597 = vmatpush1.bf16.msra.mxu0 0
      %598 = vmatprep.subr.bf16.mxu0 0
      %599 = vmatpush1.bf16.msra.mxu0 0
      %600 = vmatprep.subr.bf16.mxu0 0
      %601 = vmatpush1.bf16.msra.mxu0 0
      %602 = vmatprep.subr.bf16.mxu0 %v590
      %603 = vmatpush1.bf16.msra.mxu0 %v587
      %604 = vmatprep.subr.bf16.mxu0 %v574
      %605 = vmatpush1.bf16.msra.mxu0 %v573
      %606 = vmatprep.subr.bf16.mxu0 %v572
      %607 = vmatpush1.bf16.msra.mxu0 %v571
      %608 = vmatprep.subr.bf16.mxu0 0
      %609 = vmatpush2.bf16.msra.mxu0 0
      %610 = vmatprep.subr.bf16.mxu0 0
      %611 = vmatpush2.bf16.msra.mxu0 0
      %612 = vmatprep.subr.bf16.mxu0 0
      %613 = vmatpush2.bf16.msra.mxu0 0
      %614 = vmatprep.subr.bf16.mxu0 0
      %615 = vmatpush2.bf16.msra.mxu0 0
      %616 = vmatprep.subr.bf16.mxu0 0
      %617 = vmatpush2.bf16.msra.mxu0 0
      %618 = vmatprep.subr.bf16.mxu0 0
      %619 = vmatpush2.bf16.msra.mxu0 0
      %620 = vmatprep.subr.bf16.mxu0 0
      %621 = vmatpush2.bf16.msra.mxu0 0
      %622 = vmatprep.subr.bf16.mxu0 0
      %623 = vmatpush2.bf16.msra.mxu0 0
      %624 = vmatprep.mubr.bf16.mxu0 0
      %625 = vmatmul.mubr.bf16.gmra.mxu0 %v583
      %v626 = vpop.f32.mrf.mxu0
      %v627 = vadd.f32 %v554, %v626
      %v628 = vpop.f32.mrf.mxu0
      %v629 = vadd.f32 %v554, %v628
      %v630 = vpop.f32.mrf.mxu0
      %v631 = vpop.f32.mrf.mxu0
      %632 = vdwg.mxu0
      %v633 = vmax.f32 %v627, 0.0
      %v634 = vmax.f32 %v629, 0.0
      %635 = vst [vmem:[%s197] sm:$0xff] %v633
      %636 = vst [vmem:[%s197 + $0x8] sm:$0xff] %v634
      %p637 = scmp.lt.s32.totalorder %s15, 1
      %s638 = scalar_select %p637, %s15, 1
      %s639 = smul.addr %s638, 2
      %s640 = smul.addr %s639, 8
      %s641 = scalar_lea.vmem %s4, %s640
      // Predicated region
      $region37: #{conv3x3_bias_relu.1} parent=35 // pred_check
        %p642 = pneg %p122
      $region38: #{conv3x3_bias_relu.1} parent=35 // pred_check_branch
        %644 = sbr.rel (%p642) target = $region40
      $region39: #{conv3x3_bias_relu.1} parent=35 // pred_region
        _
      $region40: #{conv3x3_bias_relu.1} parent=35 // pred_fallthru
        _
    $region36: #{conv3x3_bias_relu.1} parent=5 // pred_fallthru
      _
    %p645 = scmp.le.s32.totalorder 2, %s10
    // Predicated region
    $region41: #{conv3x3_bias_relu.1} parent=5 // pred_check
      %p646 = pneg %p645
    $region42: #{conv3x3_bias_relu.1} parent=5 // pred_check_branch
      %648 = sbr.rel (%p646) target = $region44
    $region43: #{conv3x3_bias_relu.1} parent=5 // pred_region
      %s649 = ssub.s32 %s10, 2
      // Predicated region
      $region45: #{conv3x3_bias_relu.1} parent=43 // pred_check
        %p650 = pneg %p128
      $region46: #{conv3x3_bias_relu.1} parent=43 // pred_check_branch
        %652 = sbr.rel (%p650) target = $region48
      $region47: #{conv3x3_bias_relu.1} parent=43 // pred_region
        %p653 = scmp.lt.s32.totalorder %s16, 1
        %s654 = scalar_select %p653, %s16, 1
        %s655 = smul.addr %s654, 2
        %s656 = smul.addr %s655, 8
        %s657 = scalar_lea.vmem %s4, %s656
      $region48: #{conv3x3_bias_relu.1} parent=43 // pred_fallthru
        _
    $region44: #{conv3x3_bias_relu.1} parent=5 // pred_fallthru
      _
  $region6: #{conv3x3_bias_relu.1} parent=0 // loop_footer
    %s14 = sadd.s32 1, %s10
  $region7: #{conv3x3_bias_relu.1} parent=0 // loop_footer_branch
    %9 = sbr.rel target = $region3
  $region8: #{conv3x3_bias_relu.1} parent=0 // loop_exit
    _

</llo_original>
